<compile_context>
chip_gen: v6e
topology: v6e:2x2x1
jax: 0.10.0
libtpu: 0.0.40
codegen_flags: <defaults>
</compile_context>

<pallas_src>
import jax
import jax.numpy as jnp
from jax import lax
from jax.experimental import pallas as pl
from jax.experimental.pallas import tpu as pltpu


def _round_up(x, m):
    return ((x + m - 1) // m) * m


# ---------------------------------------------------------------------------
# Fused kernel: in-VMEM embedding lookup (one-hot @ table on the MXU) + scores.
# ---------------------------------------------------------------------------
def _fused_score_kernel(u_tbl_ref, i_tbl_ref, u_idx_ref, p_idx_ref, n_idx_ref,
                        out_ref):
    u_tbl = u_tbl_ref[...].astype(jnp.float32)      # (U, D), resident in VMEM
    i_tbl = i_tbl_ref[...].astype(jnp.float32)      # (I, D), resident in VMEM
    tb = u_idx_ref.shape[0]

    def gather(tbl, idx_col):                        # idx_col: (tb, 1) int32
        n_rows = tbl.shape[0]
        row_ids = lax.broadcasted_iota(jnp.int32, (tb, n_rows), 1)
        onehot = (row_ids == idx_col).astype(jnp.float32)       # (tb, n_rows)
        # Exactly one 1.0 per row -> MXU matmul acts as a row select.
        return jnp.dot(onehot, tbl, preferred_element_type=jnp.float32)

    eu = gather(u_tbl, u_idx_ref[...])               # (tb, D)
    ep = gather(i_tbl, p_idx_ref[...])
    en = gather(i_tbl, n_idx_ref[...])

    pos = jnp.sum(eu * ep, axis=-1, keepdims=True)   # (tb, 1)
    neg = jnp.sum(eu * en, axis=-1, keepdims=True)   # (tb, 1)

    # Merge into one (tb, 2) tile: column 0 = pos, column 1 = neg.
    col = lax.broadcasted_iota(jnp.int32, (tb, 2), 1)
    out_ref[...] = jnp.where(col == 0, pos, neg)


# ---------------------------------------------------------------------------
# Fallback kernel (tables too big for VMEM): pre-gathered rows -> scores.
# ---------------------------------------------------------------------------
def _score_kernel(u_ref, p_ref, n_ref, out_ref):
    u = u_ref[...].astype(jnp.float32)
    p = p_ref[...].astype(jnp.float32)
    n = n_ref[...].astype(jnp.float32)
    pos = jnp.sum(u * p, axis=-1, keepdims=True)
    neg = jnp.sum(u * n, axis=-1, keepdims=True)
    col = lax.broadcasted_iota(jnp.int32, (u.shape[0], 2), 1)
    out_ref[...] = jnp.where(col == 0, pos, neg)


def fedprox_forward(embed_user_table, embed_item_table, users, posItems, negItems,
                    *, tile_b=None):
    """Returns (posScores, negScores), each of shape (B,) float32."""
    B = users.shape[0]
    U, D = embed_user_table.shape
    I, Di = embed_item_table.shape
    assert D == Di

    # Batch tile: multiple of 8 (f32 sublanes), capped at 512 rows
    # (amortizes ~0.35 us/grid-step overhead, stays well inside v7x VMEM).
    if tile_b is None:
        tile_b = min(512, _round_up(B, 8))
    tile_b = max(8, _round_up(tile_b, 8))
    B_pad = _round_up(B, tile_b)
    grid = (B_pad // tile_b,)

    # Rough VMEM estimate for the fused path (double-buffered inputs,
    # lane-padded tiles, one-hot + gathered intermediates).
    lane = lambda n: _round_up(n, 128)
    itemsize = embed_user_table.dtype.itemsize
    est_vmem = (
        2 * (U + I) * lane(D) * itemsize          # resident tables (x2 buffers)
        + 2 * 3 * tile_b * lane(1) * 4            # index tiles
        + 2 * tile_b * lane(2) * 4                # output tiles
        + 3 * tile_b * lane(max(U, I)) * 4        # one-hot intermediates
        + 3 * tile_b * lane(D) * 4                # gathered rows
    )
    fuse_gather = est_vmem <= 20 * 1024 * 1024

    out_spec = pl.BlockSpec((tile_b, 2), lambda i: (i, 0))

    if fuse_gather:
        def pad_idx(idx):
            idx = idx.astype(jnp.int32)
            if B_pad != B:
                idx = jnp.pad(idx, (0, B_pad - B))
            return idx.reshape(B_pad, 1)

        u_idx, p_idx, n_idx = (pad_idx(x) for x in (users, posItems, negItems))
        idx_spec = pl.BlockSpec((tile_b, 1), lambda i: (i, 0))

        scores = pl.pallas_call(
            _fused_score_kernel,
            out_shape=jax.ShapeDtypeStruct((B_pad, 2), jnp.float32),
            grid_spec=pltpu.PrefetchScalarGridSpec(
                num_scalar_prefetch=0,
                grid=grid,
                in_specs=[
                    pl.BlockSpec((U, D), lambda i: (0, 0)),   # user table, resident
                    pl.BlockSpec((I, D), lambda i: (0, 0)),   # item table, resident
                    idx_spec, idx_spec, idx_spec,
                ],
                out_specs=out_spec,
            ),
            compiler_params=pltpu.CompilerParams(
                dimension_semantics=("parallel",),
                vmem_limit_bytes=32 * 1024 * 1024,
            ),
        )(embed_user_table, embed_item_table, u_idx, p_idx, n_idx)
    else:
        # TODO(synk): for tables too large for VMEM, a manual double-buffered
        # DMA row-gather (memory_space=pl.ANY + make_async_copy) would fuse the
        # lookup too; for now fall back to an XLA gather feeding the score kernel.
        eu = jnp.take(embed_user_table, users, axis=0)
        ep = jnp.take(embed_item_table, posItems, axis=0)
        en = jnp.take(embed_item_table, negItems, axis=0)
        if B_pad != B:
            pad = ((0, B_pad - B), (0, 0))
            eu, ep, en = (jnp.pad(x, pad) for x in (eu, ep, en))
        row_spec = pl.BlockSpec((tile_b, D), lambda i: (i, 0))

        scores = pl.pallas_call(
            _score_kernel,
            out_shape=jax.ShapeDtypeStruct((B_pad, 2), jnp.float32),
            grid_spec=pltpu.PrefetchScalarGridSpec(
                num_scalar_prefetch=0,
                grid=grid,
                in_specs=[row_spec, row_spec, row_spec],
                out_specs=out_spec,
            ),
            compiler_params=pltpu.CompilerParams(
                dimension_semantics=("parallel",)),
        )(eu, ep, en)

    return scores[:B, 0], scores[:B, 1]


def _reference(embed_user_table, embed_item_table, users, posItems, negItems):
    eu = embed_user_table[users]
    ep = embed_item_table[posItems]
    en = embed_item_table[negItems]
    return (eu * ep).sum(-1), (eu * en).sum(-1)


if __name__ == "__main__":
    # Small, deterministic setup consistent with the module's __init__.
    userCount, itemCount, embedSize = 16, 32, 32
    B = 8

    key = jax.random.PRNGKey(0)
    k_u, k_i, k_users, k_pos, k_neg = jax.random.split(key, 5)

    embed_user_table = jax.random.normal(k_u, (userCount, embedSize), jnp.float32) * 0.1
    embed_item_table = jax.random.normal(k_i, (itemCount, embedSize), jnp.float32) * 0.1

    users = jax.random.randint(k_users, (B,), 0, userCount)
    posItems = jax.random.randint(k_pos, (B,), 0, itemCount)
    negItems = jax.random.randint(k_neg, (B,), 0, itemCount)
    # `seqs` is unused in forward(), matching the PyTorch module.

    pos_scores, neg_scores = fedprox_forward(
        embed_user_table, embed_item_table, users, posItems, negItems)
    jax.block_until_ready((pos_scores, neg_scores))

    ref_pos, ref_neg = _reference(
        embed_user_table, embed_item_table, users, posItems, negItems)

    assert pos_scores.shape == (B,) and neg_scores.shape == (B,)
    assert jnp.allclose(pos_scores, ref_pos, atol=1e-4, rtol=1e-4)
    assert jnp.allclose(neg_scores, ref_neg, atol=1e-4, rtol=1e-4)

    print("KERNEL_OK")
</pallas_src>

<mosaic_0001>
module attributes {stable_mosaic.version = 11 : i64} {
  func.func @_fused_score_kernel(%arg0: i32, %arg1: memref<16x32xf32, #tpu.memory_space<vmem>>, %arg2: memref<32x32xf32, #tpu.memory_space<vmem>>, %arg3: memref<8x1xi32, #tpu.memory_space<vmem>>, %arg4: memref<8x1xi32, #tpu.memory_space<vmem>>, %arg5: memref<8x1xi32, #tpu.memory_space<vmem>>, %arg6: memref<8x2xf32, #tpu.memory_space<vmem>>) attributes {dimension_semantics = [#tpu.dimension_semantics<parallel>], iteration_bounds = array<i64: 1>, scalar_prefetch = 0 : i64, scratch_operands = 0 : i64, tpu.core_type = #tpu.core_type<tc>, window_params = [{pipeline_mode = #tpu.pipeline_mode<synchronous>, transform_indices = @transform_0, window_bounds = array<i64: 16, 32>}, {pipeline_mode = #tpu.pipeline_mode<synchronous>, transform_indices = @transform_1, window_bounds = array<i64: 32, 32>}, {transform_indices = @transform_2, window_bounds = array<i64: 8, 1>}, {transform_indices = @transform_3, window_bounds = array<i64: 8, 1>}, {transform_indices = @transform_4, window_bounds = array<i64: 8, 1>}, {transform_indices = @transform_5, window_bounds = array<i64: 8, 2>}]} {
    %c0 = arith.constant 0 : index
    %c0_0 = arith.constant 0 : index
    %0 = vector.load %arg1[%c0, %c0_0] : memref<16x32xf32, #tpu.memory_space<vmem>>, vector<16x32xf32>
    %c0_1 = arith.constant 0 : index
    %c0_2 = arith.constant 0 : index
    %1 = vector.load %arg2[%c0_1, %c0_2] : memref<32x32xf32, #tpu.memory_space<vmem>>, vector<32x32xf32>
    %c0_3 = arith.constant 0 : index
    %c0_4 = arith.constant 0 : index
    %2 = vector.load %arg3[%c0_3, %c0_4] : memref<8x1xi32, #tpu.memory_space<vmem>>, vector<8x1xi32>
    %3 = tpu.iota {dimensions = array<i32: 1>} : vector<8x16xi32>
    %4 = vector.broadcast %2 : vector<8x1xi32> to vector<8x16xi32>
    %5 = arith.cmpi eq, %3, %4 : vector<8x16xi32>
    %6 = arith.extui %5 : vector<8x16xi1> to vector<8x16xi32>
    %7 = arith.sitofp %6 : vector<8x16xi32> to vector<8x16xf32>
    %cst = arith.constant dense<0.000000e+00> : vector<8x32xf32>
    %8 = tpu.matmul %7, %0, %cst {dimension_numbers = #tpu.dot_dimension_numbers<[1], [0], [0], [1], [0, 0, 1, 1], [], []>} : vector<8x16xf32>, vector<16x32xf32>, vector<8x32xf32> -> vector<8x32xf32>
    %c0_5 = arith.constant 0 : index
    %c0_6 = arith.constant 0 : index
    %9 = vector.load %arg4[%c0_5, %c0_6] : memref<8x1xi32, #tpu.memory_space<vmem>>, vector<8x1xi32>
    %10 = tpu.iota {dimensions = array<i32: 1>} : vector<8x32xi32>
    %11 = vector.broadcast %9 : vector<8x1xi32> to vector<8x32xi32>
    %12 = arith.cmpi eq, %10, %11 : vector<8x32xi32>
    %13 = arith.extui %12 : vector<8x32xi1> to vector<8x32xi32>
    %14 = arith.sitofp %13 : vector<8x32xi32> to vector<8x32xf32>
    %cst_7 = arith.constant dense<0.000000e+00> : vector<8x32xf32>
    %15 = tpu.matmul %14, %1, %cst_7 {dimension_numbers = #tpu.dot_dimension_numbers<[1], [0], [0], [1], [0, 0, 1, 1], [], []>} : vector<8x32xf32>, vector<32x32xf32>, vector<8x32xf32> -> vector<8x32xf32>
    %c0_8 = arith.constant 0 : index
    %c0_9 = arith.constant 0 : index
    %16 = vector.load %arg5[%c0_8, %c0_9] : memref<8x1xi32, #tpu.memory_space<vmem>>, vector<8x1xi32>
    %17 = tpu.iota {dimensions = array<i32: 1>} : vector<8x32xi32>
    %18 = vector.broadcast %16 : vector<8x1xi32> to vector<8x32xi32>
    %19 = arith.cmpi eq, %17, %18 : vector<8x32xi32>
    %20 = arith.extui %19 : vector<8x32xi1> to vector<8x32xi32>
    %21 = arith.sitofp %20 : vector<8x32xi32> to vector<8x32xf32>
    %cst_10 = arith.constant dense<0.000000e+00> : vector<8x32xf32>
    %22 = tpu.matmul %21, %1, %cst_10 {dimension_numbers = #tpu.dot_dimension_numbers<[1], [0], [0], [1], [0, 0, 1, 1], [], []>} : vector<8x32xf32>, vector<32x32xf32>, vector<8x32xf32> -> vector<8x32xf32>
    %23 = arith.mulf %8, %15 : vector<8x32xf32>
    %cst_11 = arith.constant dense<0.000000e+00> : vector<8xf32>
    %24 = vector.multi_reduction <add>, %23, %cst_11 [1] : vector<8x32xf32> to vector<8xf32>
    %25 = vector.shape_cast %24 : vector<8xf32> to vector<8x1xf32>
    %26 = arith.mulf %8, %22 : vector<8x32xf32>
    %cst_12 = arith.constant dense<0.000000e+00> : vector<8xf32>
    %27 = vector.multi_reduction <add>, %26, %cst_12 [1] : vector<8x32xf32> to vector<8xf32>
    %28 = vector.shape_cast %27 : vector<8xf32> to vector<8x1xf32>
    %29 = tpu.iota {dimensions = array<i32: 1>} : vector<8x2xi32>
    %c0_i32 = arith.constant 0 : i32
    %30 = vector.broadcast %c0_i32 : i32 to vector<8x2xi32>
    %31 = arith.cmpi eq, %29, %30 : vector<8x2xi32>
    %32 = vector.shape_cast %25 : vector<8x1xf32> to vector<8x1xf32>
    %33 = vector.broadcast %32 : vector<8x1xf32> to vector<8x2xf32>
    %34 = vector.shape_cast %28 : vector<8x1xf32> to vector<8x1xf32>
    %35 = vector.broadcast %34 : vector<8x1xf32> to vector<8x2xf32>
    %36 = arith.select %31, %33, %35 : vector<8x2xi1>, vector<8x2xf32>
    %c0_13 = arith.constant 0 : index
    %c0_14 = arith.constant 0 : index
    %37 = vector.load %arg6[%c0_13, %c0_14] : memref<8x2xf32, #tpu.memory_space<vmem>>, vector<8x2xf32>
    tpu.vector_store %arg6[%c0_13, %c0_14], %36 {strides = array<i32>} : memref<8x2xf32, #tpu.memory_space<vmem>>, vector<8x2xf32>,
    return
  }
  func.func @transform_0(%arg0: i32) -> (i32, i32) {
    %c0_i32 = arith.constant 0 : i32
    %c0_i32_0 = arith.constant 0 : i32
    %c0_i32_1 = arith.constant 0 : i32
    return %c0_i32, %c0_i32_0 : i32, i32
  }
  func.func @transform_1(%arg0: i32) -> (i32, i32) {
    %c0_i32 = arith.constant 0 : i32
    %c0_i32_0 = arith.constant 0 : i32
    %c0_i32_1 = arith.constant 0 : i32
    return %c0_i32, %c0_i32_0 : i32, i32
  }
  func.func @transform_2(%arg0: i32) -> (i32, i32) {
    %c0_i32 = arith.constant 0 : i32
    %c0_i32_0 = arith.constant 0 : i32
    return %arg0, %c0_i32 : i32, i32
  }
  func.func @transform_3(%arg0: i32) -> (i32, i32) {
    %c0_i32 = arith.constant 0 : i32
    %c0_i32_0 = arith.constant 0 : i32
    return %arg0, %c0_i32 : i32, i32
  }
  func.func @transform_4(%arg0: i32) -> (i32, i32) {
    %c0_i32 = arith.constant 0 : i32
    %c0_i32_0 = arith.constant 0 : i32
    return %arg0, %c0_i32 : i32, i32
  }
  func.func @transform_5(%arg0: i32) -> (i32, i32) {
    %c0_i32 = arith.constant 0 : i32
    %c0_i32_0 = arith.constant 0 : i32
    return %arg0, %c0_i32 : i32, i32
  }
}

</mosaic_0001>

<llo_original>
// kernel: tpu_custom_call.1
$region0: #{tpu_custom_call.1}
  #allocation0 [shape = 'u32[]', space=smem, size = 0x4, offset = 0x4, fixed_abs, tag = 'smem constant byte address 0x4 - core index']
  #allocation1 [shape = 'u32[144,128]{1,0:T(1,128)}', space=vmem, size = 0x12000, scoped, tag = 'internal scratch']
  %s0 = inlined_call_operand.vmem [shape: f32[16,32], index: 0, kind: input, shape index: {}]
  %s1 = inlined_call_operand.hbm [shape: f32[32,32], index: 1, kind: input, shape index: {}]
  %s2 = inlined_call_operand.vmem [shape: s32[8,1], index: 2, kind: input, shape index: {}]
  %s3 = inlined_call_operand.vmem [shape: s32[8,1], index: 3, kind: input, shape index: {}]
  %s4 = inlined_call_operand.vmem [shape: s32[8,1], index: 4, kind: input, shape index: {}]
  %s5 = inlined_call_operand.vmem [shape: f32[8,2], index: 5, kind: output, shape index: {}]
  %s6 = sld [smem:[#allocation0]]
  $region34: #{tpu_custom_call.1} parent=0
    _
  %s8 = ssub.s32 1, %s6
  %s9 = scalar_select 0, %s8, %s6
  $region1: #{tpu_custom_call.1} parent=0
    #allocation2 [shape = 'u8[16384]{0}', space=vmem, size = 0x4000, scoped, tag = 'input window, operand 1, single buffered']
    #allocation3 [shape = 's32[1]{0}', space=sflag, size = 0x4, scoped, tag = 'scoped memory for tpu_custom_call.1']
    %10 = vsyncpa [#allocation3], 0
    // Predicated region
    $region2: #{tpu_custom_call.1} parent=1 // pred_check
      _
    $region3: #{tpu_custom_call.1} parent=1 // pred_check_branch
      %12 = sbr.rel (0) target = $region5
    $region4: #{tpu_custom_call.1} parent=1 // pred_region
      _
    $region5: #{tpu_custom_call.1} parent=1 // pred_fallthru
      _
    // Predicated region
    $region6: #{tpu_custom_call.1} parent=1 // pred_check
      _
    $region7: #{tpu_custom_call.1} parent=1 // pred_check_branch
      %14 = sbr.rel (0) target = $region9
    $region8: #{tpu_custom_call.1} parent=1 // pred_region
      %s16 = ssub.s32 512, 512
      %17 = vsyncadd [#allocation3], %s16
      %s18 = sshll.u32 [#allocation2], 4
      %s19 = int_to_ptr.vmem [resolvable:$true] %s18
      %24 = dma.hbm_to_vmem [thread:$0]  %s1, 512, %s19, [#allocation3], 128, 128, 8
    $region9: #{tpu_custom_call.1} parent=1 // pred_fallthru
      _
    // Predicated region
    $region10: #{tpu_custom_call.1} parent=1 // pred_check
      _
    $region11: #{tpu_custom_call.1} parent=1 // pred_check_branch
      %26 = sbr.rel (0) target = $region13
    $region12: #{tpu_custom_call.1} parent=1 // pred_region
      _
    $region13: #{tpu_custom_call.1} parent=1 // pred_fallthru
      _
    // Predicated region
    $region14: #{tpu_custom_call.1} parent=1 // pred_check
      _
    $region15: #{tpu_custom_call.1} parent=1 // pred_check_branch
      %28 = sbr.rel (0) target = $region17
    $region16: #{tpu_custom_call.1} parent=1 // pred_region
      _
    $region17: #{tpu_custom_call.1} parent=1 // pred_fallthru
      _
    // Predicated region
    $region18: #{tpu_custom_call.1} parent=1 // pred_check
      _
    $region19: #{tpu_custom_call.1} parent=1 // pred_check_branch
      %30 = sbr.rel (0) target = $region21
    $region20: #{tpu_custom_call.1} parent=1 // pred_region
      _
    $region21: #{tpu_custom_call.1} parent=1 // pred_fallthru
      _
    // Predicated region
    $region22: #{tpu_custom_call.1} parent=1 // pred_check
      _
    $region23: #{tpu_custom_call.1} parent=1 // pred_check_branch
      %32 = sbr.rel (0) target = $region25
    $region24: #{tpu_custom_call.1} parent=1 // pred_region
      %33 = dma.done [#allocation3], 512
    $region25: #{tpu_custom_call.1} parent=1 // pred_fallthru
      _
    %v34 = vld [vmem:[%s0] sm:$0xff]
    %v35 = vld [vmem:[%s0 + $0x8] sm:$0xff]
    %v36 = vld [vmem:[#allocation2] sm:$0xff]
    %v37 = vld [vmem:[#allocation2 + $0x8] sm:$0xff]
    %v38 = vld [vmem:[#allocation2 + $0x10] sm:$0xff]
    %v39 = vld [vmem:[#allocation2 + $0x18] sm:$0xff]
    %v40 = vld [vmem:[%s2] sm:$0xff]
    %v41 = vlaneseq
    %v42 = vand.u32 %v41, 127
    %43 = vset.pattern.permute.xlu0 0
    %44 = vperm.xlu0 %43, %v40
    %v45 = vpop.permute.xlu0 %44
    %vm46 = vcmp.eq.s32.totalorder %v42, %v45
    %v47 = vsel %vm46, 1, 0
    %v48 = vcvt.s32.f32 %v47
    %vm49 = vcmask 130048
    %v51 = vsel %vm49, %v48, 0
    %53 = vmatprep.subr.mxu0 0.0
    %54 = vmatpush1.msra.mxu0 0.0
    %55 = vmatprep.subr.mxu0 0.0
    %56 = vmatpush1.msra.mxu0 0.0
    %57 = vmatprep.subr.mxu0 0.0
    %58 = vmatpush1.msra.mxu0 0.0
    %59 = vmatprep.subr.mxu0 0.0
    %60 = vmatpush1.msra.mxu0 0.0
    %61 = vmatprep.subr.mxu0 0.0
    %62 = vmatpush1.msra.mxu0 0.0
    %63 = vmatprep.subr.mxu0 0.0
    %64 = vmatpush1.msra.mxu0 0.0
    %65 = vmatprep.subr.mxu0 0.0
    %66 = vmatpush1.msra.mxu0 0.0
    %67 = vmatprep.subr.mxu0 0.0
    %68 = vmatpush1.msra.mxu0 0.0
    %69 = vmatprep.subr.mxu0 0.0
    %70 = vmatpush1.msra.mxu0 0.0
    %71 = vmatprep.subr.mxu0 0.0
    %72 = vmatpush1.msra.mxu0 0.0
    %73 = vmatprep.subr.mxu0 0.0
    %74 = vmatpush1.msra.mxu0 0.0
    %75 = vmatprep.subr.mxu0 0.0
    %76 = vmatpush1.msra.mxu0 0.0
    %77 = vmatprep.subr.mxu0 0.0
    %78 = vmatpush1.msra.mxu0 0.0
    %79 = vmatprep.subr.mxu0 0.0
    %80 = vmatpush1.msra.mxu0 0.0
    %81 = vmatprep.subr.mxu0 0.0
    %82 = vmatpush1.msra.mxu0 %v35
    %83 = vmatprep.subr.mxu0 0.0
    %84 = vmatpush1.msra.mxu0 %v34
    %85 = vmatprep.subr.mxu0 0.0
    %86 = vmatpush2.msra.mxu0 0.0
    %87 = vmatprep.subr.mxu0 0.0
    %88 = vmatpush2.msra.mxu0 0.0
    %89 = vmatprep.subr.mxu0 0.0
    %90 = vmatpush2.msra.mxu0 0.0
    %91 = vmatprep.subr.mxu0 0.0
    %92 = vmatpush2.msra.mxu0 0.0
    %93 = vmatprep.subr.mxu0 0.0
    %94 = vmatpush2.msra.mxu0 0.0
    %95 = vmatprep.subr.mxu0 0.0
    %96 = vmatpush2.msra.mxu0 0.0
    %97 = vmatprep.subr.mxu0 0.0
    %98 = vmatpush2.msra.mxu0 0.0
    %99 = vmatprep.subr.mxu0 0.0
    %100 = vmatpush2.msra.mxu0 0.0
    %101 = vmatprep.subr.mxu0 0.0
    %102 = vmatpush2.msra.mxu0 0.0
    %103 = vmatprep.subr.mxu0 0.0
    %104 = vmatpush2.msra.mxu0 0.0
    %105 = vmatprep.subr.mxu0 0.0
    %106 = vmatpush2.msra.mxu0 0.0
    %107 = vmatprep.subr.mxu0 0.0
    %108 = vmatpush2.msra.mxu0 0.0
    %109 = vmatprep.subr.mxu0 0.0
    %110 = vmatpush2.msra.mxu0 0.0
    %111 = vmatprep.subr.mxu0 0.0
    %112 = vmatpush2.msra.mxu0 0.0
    %113 = vmatprep.subr.mxu0 0.0
    %114 = vmatpush2.msra.mxu0 0.0
    %115 = vmatprep.subr.mxu0 0.0
    %116 = vmatpush2.msra.mxu0 0.0
    %117 = vmatprep.mubr.f32.mxu0 0.0
    %118 = vmatmul.mubr.f32.gmra.mxu0 %v51
    %v119 = vpop.f32.mrf.mxu0
    %v120 = vadd.f32 0.0, %v119
    %v121 = vpop.f32.mrf.mxu0
    %122 = vdwg.mxu0
    %v123 = vld [vmem:[%s3] sm:$0xff]
    %124 = vset.pattern.permute.xlu0 0
    %125 = vperm.xlu0 %124, %v123
    %v126 = vpop.permute.xlu0 %125
    %vm127 = vcmp.eq.s32.totalorder %v42, %v126
    %v128 = vsel %vm127, 1, 0
    %v129 = vcvt.s32.f32 %v128
    %vm130 = vcmask 261120
    %v132 = vsel %vm130, %v129, 0
    %134 = vmatprep.subr.mxu0 0.0
    %135 = vmatpush1.msra.mxu0 0.0
    %136 = vmatprep.subr.mxu0 0.0
    %137 = vmatpush1.msra.mxu0 0.0
    %138 = vmatprep.subr.mxu0 0.0
    %139 = vmatpush1.msra.mxu0 0.0
    %140 = vmatprep.subr.mxu0 0.0
    %141 = vmatpush1.msra.mxu0 0.0
    %142 = vmatprep.subr.mxu0 0.0
    %143 = vmatpush1.msra.mxu0 0.0
    %144 = vmatprep.subr.mxu0 0.0
    %145 = vmatpush1.msra.mxu0 0.0
    %146 = vmatprep.subr.mxu0 0.0
    %147 = vmatpush1.msra.mxu0 0.0
    %148 = vmatprep.subr.mxu0 0.0
    %149 = vmatpush1.msra.mxu0 0.0
    %150 = vmatprep.subr.mxu0 0.0
    %151 = vmatpush1.msra.mxu0 0.0
    %152 = vmatprep.subr.mxu0 0.0
    %153 = vmatpush1.msra.mxu0 0.0
    %154 = vmatprep.subr.mxu0 0.0
    %155 = vmatpush1.msra.mxu0 0.0
    %156 = vmatprep.subr.mxu0 0.0
    %157 = vmatpush1.msra.mxu0 0.0
    %158 = vmatprep.subr.mxu0 0.0
    %159 = vmatpush1.msra.mxu0 %v39
    %160 = vmatprep.subr.mxu0 0.0
    %161 = vmatpush1.msra.mxu0 %v38
    %162 = vmatprep.subr.mxu0 0.0
    %163 = vmatpush1.msra.mxu0 %v37
    %164 = vmatprep.subr.mxu0 0.0
    %165 = vmatpush1.msra.mxu0 %v36
    %166 = vmatprep.subr.mxu0 0.0
    %167 = vmatpush2.msra.mxu0 0.0
    %168 = vmatprep.subr.mxu0 0.0
    %169 = vmatpush2.msra.mxu0 0.0
    %170 = vmatprep.subr.mxu0 0.0
    %171 = vmatpush2.msra.mxu0 0.0
    %172 = vmatprep.subr.mxu0 0.0
    %173 = vmatpush2.msra.mxu0 0.0
    %174 = vmatprep.subr.mxu0 0.0
    %175 = vmatpush2.msra.mxu0 0.0
    %176 = vmatprep.subr.mxu0 0.0
    %177 = vmatpush2.msra.mxu0 0.0
    %178 = vmatprep.subr.mxu0 0.0
    %179 = vmatpush2.msra.mxu0 0.0
    %180 = vmatprep.subr.mxu0 0.0
    %181 = vmatpush2.msra.mxu0 0.0
    %182 = vmatprep.subr.mxu0 0.0
    %183 = vmatpush2.msra.mxu0 0.0
    %184 = vmatprep.subr.mxu0 0.0
    %185 = vmatpush2.msra.mxu0 0.0
    %186 = vmatprep.subr.mxu0 0.0
    %187 = vmatpush2.msra.mxu0 0.0
    %188 = vmatprep.subr.mxu0 0.0
    %189 = vmatpush2.msra.mxu0 0.0
    %190 = vmatprep.subr.mxu0 0.0
    %191 = vmatpush2.msra.mxu0 0.0
    %192 = vmatprep.subr.mxu0 0.0
    %193 = vmatpush2.msra.mxu0 0.0
    %194 = vmatprep.subr.mxu0 0.0
    %195 = vmatpush2.msra.mxu0 0.0
    %196 = vmatprep.subr.mxu0 0.0
    %197 = vmatpush2.msra.mxu0 0.0
    %198 = vmatprep.mubr.f32.mxu0 0.0
    %199 = vmatmul.mubr.f32.gmra.mxu0 %v132
    %v200 = vpop.f32.mrf.mxu0
    %v201 = vadd.f32 0.0, %v200
    %v202 = vpop.f32.mrf.mxu0
    %203 = vdwg.mxu0
    %v204 = vld [vmem:[%s4] sm:$0xff]
    %205 = vset.pattern.permute.xlu0 0
    %206 = vperm.xlu0 %205, %v204
    %v207 = vpop.permute.xlu0 %206
    %vm208 = vcmp.eq.s32.totalorder %v42, %v207
    %v209 = vsel %vm208, 1, 0
    %v210 = vcvt.s32.f32 %v209
    %v212 = vsel %vm130, %v210, 0
    %214 = vmatprep.subr.mxu0 0.0
    %215 = vmatpush1.msra.mxu0 0.0
    %216 = vmatprep.subr.mxu0 0.0
    %217 = vmatpush1.msra.mxu0 0.0
    %218 = vmatprep.subr.mxu0 0.0
    %219 = vmatpush1.msra.mxu0 0.0
    %220 = vmatprep.subr.mxu0 0.0
    %221 = vmatpush1.msra.mxu0 0.0
    %222 = vmatprep.subr.mxu0 0.0
    %223 = vmatpush1.msra.mxu0 0.0
    %224 = vmatprep.subr.mxu0 0.0
    %225 = vmatpush1.msra.mxu0 0.0
    %226 = vmatprep.subr.mxu0 0.0
    %227 = vmatpush1.msra.mxu0 0.0
    %228 = vmatprep.subr.mxu0 0.0
    %229 = vmatpush1.msra.mxu0 0.0
    %230 = vmatprep.subr.mxu0 0.0
    %231 = vmatpush1.msra.mxu0 0.0
    %232 = vmatprep.subr.mxu0 0.0
    %233 = vmatpush1.msra.mxu0 0.0
    %234 = vmatprep.subr.mxu0 0.0
    %235 = vmatpush1.msra.mxu0 0.0
    %236 = vmatprep.subr.mxu0 0.0
    %237 = vmatpush1.msra.mxu0 0.0
    %238 = vmatprep.subr.mxu0 0.0
    %239 = vmatpush1.msra.mxu0 %v39
    %240 = vmatprep.subr.mxu0 0.0
    %241 = vmatpush1.msra.mxu0 %v38
    %242 = vmatprep.subr.mxu0 0.0
    %243 = vmatpush1.msra.mxu0 %v37
    %244 = vmatprep.subr.mxu0 0.0
    %245 = vmatpush1.msra.mxu0 %v36
    %246 = vmatprep.subr.mxu0 0.0
    %247 = vmatpush2.msra.mxu0 0.0
    %248 = vmatprep.subr.mxu0 0.0
    %249 = vmatpush2.msra.mxu0 0.0
    %250 = vmatprep.subr.mxu0 0.0
    %251 = vmatpush2.msra.mxu0 0.0
    %252 = vmatprep.subr.mxu0 0.0
    %253 = vmatpush2.msra.mxu0 0.0
    %254 = vmatprep.subr.mxu0 0.0
    %255 = vmatpush2.msra.mxu0 0.0
    %256 = vmatprep.subr.mxu0 0.0
    %257 = vmatpush2.msra.mxu0 0.0
    %258 = vmatprep.subr.mxu0 0.0
    %259 = vmatpush2.msra.mxu0 0.0
    %260 = vmatprep.subr.mxu0 0.0
    %261 = vmatpush2.msra.mxu0 0.0
    %262 = vmatprep.subr.mxu0 0.0
    %263 = vmatpush2.msra.mxu0 0.0
    %264 = vmatprep.subr.mxu0 0.0
    %265 = vmatpush2.msra.mxu0 0.0
    %266 = vmatprep.subr.mxu0 0.0
    %267 = vmatpush2.msra.mxu0 0.0
    %268 = vmatprep.subr.mxu0 0.0
    %269 = vmatpush2.msra.mxu0 0.0
    %270 = vmatprep.subr.mxu0 0.0
    %271 = vmatpush2.msra.mxu0 0.0
    %272 = vmatprep.subr.mxu0 0.0
    %273 = vmatpush2.msra.mxu0 0.0
    %274 = vmatprep.subr.mxu0 0.0
    %275 = vmatpush2.msra.mxu0 0.0
    %276 = vmatprep.subr.mxu0 0.0
    %277 = vmatpush2.msra.mxu0 0.0
    %278 = vmatprep.mubr.f32.mxu0 0.0
    %279 = vmatmul.mubr.f32.gmra.mxu0 %v212
    %v280 = vpop.f32.mrf.mxu0
    %v281 = vadd.f32 0.0, %v280
    %v282 = vpop.f32.mrf.mxu0
    %283 = vdwg.mxu0
    %v284 = vmul.f32 %v120, %v201
    %v285 = vsel %vm130, %v284, 0.0
    %286 = vadd.xlane.f32.xlu0 %v285
    %v287 = vpop.xlane.xlu0 %286
    %v288 = vmul.f32 %v120, %v281
    %v289 = vsel %vm130, %v288, 0.0
    %290 = vadd.xlane.f32.xlu0 %v289
    %v291 = vpop.xlane.xlu0 %290
    %vm292 = vcmp.eq.s32.totalorder %v42, 0
    %v293 = vsel %vm292, %v287, %v291
    %vm294 = vcmask 15360
    %295 = vst.msk [vmem:[%s5] sm:$0xff] %vm294, %v293
    // Predicated region
    $region26: #{tpu_custom_call.1} parent=1 // pred_check
      _
    $region27: #{tpu_custom_call.1} parent=1 // pred_check_branch
      %297 = sbr.rel (0) target = $region29
    $region28: #{tpu_custom_call.1} parent=1 // pred_region
      _
    $region29: #{tpu_custom_call.1} parent=1 // pred_fallthru
      _
    // Predicated region
    $region30: #{tpu_custom_call.1} parent=1 // pred_check
      _
    $region31: #{tpu_custom_call.1} parent=1 // pred_check_branch
      %299 = sbr.rel (0) target = $region33
    $region32: #{tpu_custom_call.1} parent=1 // pred_region
      _
    $region33: #{tpu_custom_call.1} parent=1 // pred_fallthru
      _
    %300 = vsyncpa [#allocation3], 1

</llo_original>
